<compile_context>
chip_gen: v7x
topology: tpu7x:2x2x1
jax: 0.10.0
libtpu: 0.0.40
codegen_flags: <defaults>
</compile_context>

<pallas_src>
import jax
import jax.numpy as jnp
from jax import lax
from jax.experimental import pallas as pl
from jax.experimental.pallas import tpu as pltpu


def _round_up(x, m):
    return ((x + m - 1) // m) * m


def _baseline_kernel(pooled_ref, wp_ref, txt_ref, out_ref):
    """One row-tile of the forward pass.

    pooled_ref: (TILE_B, K_pad)  bf16  mean-pooled patches (zero padded)
    wp_ref:     (K_pad, D_pad)   bf16  synthetic patch-embedding weight
    txt_ref:    (D_pad, R_pad)   bf16  (100 * L2-normalized text feats)^T
    out_ref:    (TILE_B, R_pad)  f32   logits
    """
    # --- image encoder stand-in: bf16 MXU matmul, f32 accumulation ----------
    feat = jnp.dot(pooled_ref[...], wp_ref[...],
                   preferred_element_type=jnp.float32)            # (TILE_B, D_pad)

    # --- image_features.norm(dim=-1, keepdim=True) in f32 -------------------
    # Padded D columns of wp are zero so they do not perturb the norm; the eps
    # clamp only guards all-zero padding rows.
    img_sq = jnp.sum(feat * feat, axis=-1, keepdims=True)         # (TILE_B, 1)
    inv_norm = lax.rsqrt(jnp.maximum(img_sq, 1e-30))              # EUP

    # --- 100.0 * image_features @ text_features.t() -------------------------
    # txt is already transposed, normalized and 100x-scaled on the host, so
    # this is a plain (M,K)@(K,N) bf16 MXU matmul with f32 accumulation.
    raw = jnp.dot(feat.astype(jnp.bfloat16), txt_ref[...],
                  preferred_element_type=jnp.float32)             # (TILE_B, R_pad)

    # Row-wise 1/||feat|| commutes with the matmul -> scale the (narrower)
    # output instead of feat (cuts VPU multiplies by D_pad/R_pad).
    out_ref[...] = raw * inv_norm


def precompute_text_features(w_text, *, d_pad, r_pad):
    """forward_text_only() + L2 normalization + 100x scale, transposed & padded.

    Constant w.r.t. the images -> hoisted out of the per-call kernel (in a real
    deployment this is computed once at init and cached).  Returned in the
    canonical (K, N) = (D_pad, R_pad) layout, bf16 for the MXU.
    """
    R, D = w_text.shape
    txt = w_text.astype(jnp.float32)
    txt = txt * lax.rsqrt(jnp.sum(txt * txt, axis=-1, keepdims=True))
    txt = 100.0 * txt
    txt_t = txt.T                                                  # (D, R)
    txt_t = jnp.pad(txt_t, ((0, d_pad - D), (0, r_pad - R)))
    return txt_t.astype(jnp.bfloat16)


def baseline_forward(images, w_patch, w_text, *, patch=8, tile_b=None):
    """Reproduces Baseline.forward(images) -> (logits, None, None).

    images:  (B, C, H, W)  float32, NCHW
    w_patch: (C*patch*patch, D) synthetic image-encoder projection
    w_text:  (R, D)             last_project.weight (nn.Linear(D, R, bias=False))
    """
    B, C, H, W = images.shape
    K, D = w_patch.shape
    R, D2 = w_text.shape
    assert D == D2
    ph, pw = H // patch, W // patch
    assert K == C * patch * patch

    # --- glue: mean-pool over the patch grid FIRST (fuses into one strided
    #     read of images), then flatten to (B, K) with (c, dy, dx) ordering.
    #     Exact fold of mean_P(patches @ Wp) == mean_P(patches) @ Wp because
    #     the stand-in encoder is linear. -----------------------------------
    pooled = images.reshape(B, C, ph, patch, pw, patch).mean(axis=(2, 4))
    pooled = pooled.reshape(B, K)                                  # (B, K) f32

    # --- lane-dense padding: last dims to multiples of 128 -------------------
    K_pad = _round_up(K, 128)
    D_pad = _round_up(D, 128)
    R_pad = _round_up(R, 128)

    # --- row tiling: >= 4 grid steps for pipelining / both v7x TCs, tile
    #     capped at 512 rows, and at most one tile of batch-padding slack. ----
    B8 = _round_up(B, 8)
    if tile_b is None:
        if B8 <= 32:
            tile_b = B8                         # tiny batch: single tile
        else:
            num_tiles = max(4, pl.cdiv(B8, 512))
            tile_b = _round_up(pl.cdiv(B8, num_tiles), 8)
    else:
        tile_b = _round_up(tile_b, 8)
    B_pad = _round_up(B8, tile_b)
    grid = (B_pad // tile_b,)

    pooled_p = jnp.pad(pooled, ((0, B_pad - B), (0, K_pad - K))).astype(jnp.bfloat16)
    wp_p = jnp.pad(w_patch, ((0, K_pad - K), (0, D_pad - D))).astype(jnp.bfloat16)
    txt_p = precompute_text_features(w_text, d_pad=D_pad, r_pad=R_pad)   # bf16

    cost = pl.CostEstimate(
        flops=2 * B_pad * K_pad * D_pad + 2 * B_pad * D_pad * R_pad,
        transcendentals=B_pad,
        bytes_accessed=(pooled_p.size * 2 + wp_p.size * 2
                        + txt_p.size * 2 + B_pad * R_pad * 4),
    )

    logits_pad = pl.pallas_call(
        _baseline_kernel,
        out_shape=jax.ShapeDtypeStruct((B_pad, R_pad), jnp.float32),
        grid=grid,
        in_specs=[
            pl.BlockSpec((tile_b, K_pad), lambda i: (i, 0),
                         memory_space=pltpu.MemorySpace.VMEM),
            pl.BlockSpec((K_pad, D_pad), lambda i: (0, 0),
                         memory_space=pltpu.MemorySpace.VMEM),
            pl.BlockSpec((D_pad, R_pad), lambda i: (0, 0),
                         memory_space=pltpu.MemorySpace.VMEM),
        ],
        out_specs=pl.BlockSpec((tile_b, R_pad), lambda i: (i, 0),
                               memory_space=pltpu.MemorySpace.VMEM),
        compiler_params=pltpu.CompilerParams(
            # Row tiles are independent -> megacore sharding on v7x.
            dimension_semantics=("parallel",),
            # Safe on every generation (v7x scoped default is 32 MiB of the
            # 64 MiB physical VMEM); tile_b<=512 with bf16 operands fits easily.
            vmem_limit_bytes=32 * 1024 * 1024,
        ),
        cost_estimate=cost,
    )(pooled_p, wp_p, txt_p)

    return logits_pad[:B, :R], None, None


def _reference(images, w_patch, w_text, *, patch=8):
    """Pure-JAX f32 reference following the PyTorch op order."""
    B, C, H, W = images.shape
    ph, pw = H // patch, W // patch
    x = images.reshape(B, C, ph, patch, pw, patch).transpose(0, 2, 4, 1, 3, 5)
    patches = x.reshape(B, ph * pw, -1)
    feat = jnp.einsum("bpk,kd->bpd", patches, w_patch).mean(axis=1)
    img_n = feat / jnp.linalg.norm(feat, axis=-1, keepdims=True)
    txt_n = w_text / jnp.linalg.norm(w_text, axis=-1, keepdims=True)
    return 100.0 * img_n @ txt_n.T


if __name__ == "__main__":
    key = jax.random.PRNGKey(0)
    k1, k2, k3 = jax.random.split(key, 3)

    B, C, H, W = 2, 3, 16, 16      # small images, NCHW
    patch = 8
    embed_dims = 32                # clip_model.text_projection.shape[1] stand-in
    num_ranks = 8                  # prompt_learner_cfg['num_ranks']

    images = jax.random.normal(k1, (B, C, H, W), dtype=jnp.float32)
    w_patch = jax.random.normal(k2, (C * patch * patch, embed_dims), dtype=jnp.float32) * 0.02
    # last_project = nn.Linear(embed_dims, num_ranks, bias=False) -> weight (num_ranks, embed_dims)
    w_text = jax.random.normal(k3, (num_ranks, embed_dims), dtype=jnp.float32) * 0.02

    logits, a, b = baseline_forward(images, w_patch, w_text, patch=patch)
    jax.block_until_ready(logits)

    ref = _reference(images, w_patch, w_text, patch=patch)
    assert logits.shape == (B, num_ranks)
    assert a is None and b is None
    # Both matmuls use bf16 MXU inputs (f32 accumulate): ~1e-2 relative error
    # on 100-scaled cosine logits -> tolerate up to ~1.0 absolute.
    err = float(jnp.max(jnp.abs(logits - ref)))
    assert jnp.allclose(logits, ref, atol=1.0, rtol=2e-2), err

    print("KERNEL_OK")
</pallas_src>

<mosaic_0001>
module attributes {stable_mosaic.version = 11 : i64} {
  func.func @_baseline_kernel(%arg0: i32, %arg1: memref<8x256xbf16, #tpu.memory_space<vmem>>, %arg2: memref<256x128xbf16, #tpu.memory_space<vmem>>, %arg3: memref<128x128xbf16, #tpu.memory_space<vmem>>, %arg4: memref<8x128xf32, #tpu.memory_space<vmem>>) attributes {dimension_semantics = [#tpu.dimension_semantics<parallel>], iteration_bounds = array<i64: 1>, scalar_prefetch = 0 : i64, scratch_operands = 0 : i64, tpu.core_type = #tpu.core_type<tc>, window_params = [{transform_indices = @transform_0, window_bounds = array<i64: 8, 256>}, {pipeline_mode = #tpu.pipeline_mode<synchronous>, transform_indices = @transform_1, window_bounds = array<i64: 256, 128>}, {pipeline_mode = #tpu.pipeline_mode<synchronous>, transform_indices = @transform_2, window_bounds = array<i64: 128, 128>}, {transform_indices = @transform_3, window_bounds = array<i64: 8, 128>}]} {
    %c0 = arith.constant 0 : index
    %c0_0 = arith.constant 0 : index
    %0 = vector.load %arg1[%c0, %c0_0] : memref<8x256xbf16, #tpu.memory_space<vmem>>, vector<8x256xbf16>
    %c0_1 = arith.constant 0 : index
    %c0_2 = arith.constant 0 : index
    %1 = vector.load %arg2[%c0_1, %c0_2] : memref<256x128xbf16, #tpu.memory_space<vmem>>, vector<256x128xbf16>
    %cst = arith.constant dense<0.000000e+00> : vector<8x128xf32>
    %2 = tpu.matmul %0, %1, %cst {dimension_numbers = #tpu.dot_dimension_numbers<[1], [0], [0], [1], [0, 0, 1, 1], [], []>} : vector<8x256xbf16>, vector<256x128xbf16>, vector<8x128xf32> -> vector<8x128xf32>
    %3 = arith.mulf %2, %2 : vector<8x128xf32>
    %cst_3 = arith.constant dense<0.000000e+00> : vector<8xf32>
    %4 = vector.multi_reduction <add>, %3, %cst_3 [1] : vector<8x128xf32> to vector<8xf32>
    %5 = vector.shape_cast %4 : vector<8xf32> to vector<8x1xf32>
    %cst_4 = arith.constant 1.000000e-30 : f32
    %6 = vector.broadcast %cst_4 : f32 to vector<8x1xf32>
    %7 = arith.maximumf %5, %6 : vector<8x1xf32>
    %8 = math.rsqrt %7 : vector<8x1xf32>
    %9 = arith.truncf %2 : vector<8x128xf32> to vector<8x128xbf16>
    %c0_5 = arith.constant 0 : index
    %c0_6 = arith.constant 0 : index
    %10 = vector.load %arg3[%c0_5, %c0_6] : memref<128x128xbf16, #tpu.memory_space<vmem>>, vector<128x128xbf16>
    %cst_7 = arith.constant dense<0.000000e+00> : vector<8x128xf32>
    %11 = tpu.matmul %9, %10, %cst_7 {dimension_numbers = #tpu.dot_dimension_numbers<[1], [0], [0], [1], [0, 0, 1, 1], [], []>} : vector<8x128xbf16>, vector<128x128xbf16>, vector<8x128xf32> -> vector<8x128xf32>
    %12 = vector.broadcast %8 : vector<8x1xf32> to vector<8x128xf32>
    %13 = arith.mulf %11, %12 : vector<8x128xf32>
    %c0_8 = arith.constant 0 : index
    %c0_9 = arith.constant 0 : index
    %14 = vector.load %arg4[%c0_8, %c0_9] : memref<8x128xf32, #tpu.memory_space<vmem>>, vector<8x128xf32>
    tpu.vector_store %arg4[%c0_8, %c0_9], %13 {strides = array<i32>} : memref<8x128xf32, #tpu.memory_space<vmem>>, vector<8x128xf32>,
    return
  }
  func.func @transform_0(%arg0: i32) -> (i32, i32) {
    %c0_i32 = arith.constant 0 : i32
    %c0_i32_0 = arith.constant 0 : i32
    return %arg0, %c0_i32 : i32, i32
  }
  func.func @transform_1(%arg0: i32) -> (i32, i32) {
    %c0_i32 = arith.constant 0 : i32
    %c0_i32_0 = arith.constant 0 : i32
    %c0_i32_1 = arith.constant 0 : i32
    return %c0_i32, %c0_i32_0 : i32, i32
  }
  func.func @transform_2(%arg0: i32) -> (i32, i32) {
    %c0_i32 = arith.constant 0 : i32
    %c0_i32_0 = arith.constant 0 : i32
    %c0_i32_1 = arith.constant 0 : i32
    return %c0_i32, %c0_i32_0 : i32, i32
  }
  func.func @transform_3(%arg0: i32) -> (i32, i32) {
    %c0_i32 = arith.constant 0 : i32
    %c0_i32_0 = arith.constant 0 : i32
    return %arg0, %c0_i32 : i32, i32
  }
}

</mosaic_0001>

<llo_original>
// kernel: tpu_custom_call.1
$region0: #{tpu_custom_call.1}
  #allocation0 [shape = 'u32[]', space=smem, size = 0x4, offset = 0x4, fixed_abs, tag = 'smem constant byte address 0x4 - core index']
  #allocation1 [shape = 'u32[144,128]{1,0:T(1,128)}', space=vmem, size = 0x12000, scoped, tag = 'internal scratch']
  %s0 = inlined_call_operand.hbm [shape: bf16[8,256], index: 0, kind: input, shape index: {}]
  %s1 = inlined_call_operand.hbm [shape: bf16[256,128], index: 1, kind: input, shape index: {}]
  %s2 = inlined_call_operand.hbm [shape: bf16[128,128], index: 2, kind: input, shape index: {}]
  %s3 = inlined_call_operand.hbm [shape: f32[8,128], index: 3, kind: output, shape index: {}]
  %s4 = sld [smem:[#allocation0]]
  $region34: #{tpu_custom_call.1} parent=0
    _
  %s6 = ssub.s32 1, %s4
  %s7 = scalar_select 0, %s6, %s4
  $region1: #{tpu_custom_call.1} parent=0
    #allocation2 [shape = 'u8[4096]{0}', space=vmem, size = 0x1000, scoped, tag = 'input window, operand 0, single buffered']
    #allocation3 [shape = 's32[1]{0}', space=sflag, size = 0x4, scoped, tag = 'scoped memory for tpu_custom_call.1']
    #allocation4 [shape = 's32[1]{0}', space=sflag, size = 0x4, scoped, tag = 'scoped memory for tpu_custom_call.1']
    #allocation5 [shape = 'u8[65536]{0}', space=vmem, size = 0x10000, scoped, tag = 'input window, operand 1, single buffered']
    #allocation6 [shape = 's32[1]{0}', space=sflag, size = 0x4, scoped, tag = 'scoped memory for tpu_custom_call.1']
    #allocation7 [shape = 'u8[32768]{0}', space=vmem, size = 0x8000, scoped, tag = 'input window, operand 2, single buffered']
    #allocation8 [shape = 'u8[4096]{0}', space=vmem, size = 0x1000, scoped, tag = 'output window, operand 0, single buffered']
    %8 = vsyncpa [#allocation3], 0
    %9 = vsyncpa [#allocation6], 0
    %10 = vsyncpa [#allocation4], 0
    // Predicated region
    $region2: #{tpu_custom_call.1} parent=1 // pred_check
      _
    $region3: #{tpu_custom_call.1} parent=1 // pred_check_branch
      %12 = sbr.rel (0) target = $region5
    $region4: #{tpu_custom_call.1} parent=1 // pred_region
      %s14 = ssub.s32 128, 128
      %15 = vsyncadd [#allocation3], %s14
      %s17 = sshll.u32 [#allocation2], 4
      %s18 = int_to_ptr.vmem [resolvable:$true] %s17
      %20 = dma.hbm_to_vmem [thread:$0]  %s0, 128, %s18, [#allocation3]
    $region5: #{tpu_custom_call.1} parent=1 // pred_fallthru
      _
    // Predicated region
    $region6: #{tpu_custom_call.1} parent=1 // pred_check
      _
    $region7: #{tpu_custom_call.1} parent=1 // pred_check_branch
      %22 = sbr.rel (0) target = $region9
    $region8: #{tpu_custom_call.1} parent=1 // pred_region
      %s24 = ssub.s32 2048, 2048
      %25 = vsyncadd [#allocation6], %s24
      %s26 = sshll.u32 [#allocation5], 4
      %s27 = int_to_ptr.vmem [resolvable:$true] %s26
      %32 = dma.hbm_to_vmem [thread:$0]  %s1, 2048, %s27, [#allocation6], 64, 64, 4
    $region9: #{tpu_custom_call.1} parent=1 // pred_fallthru
      _
    // Predicated region
    $region10: #{tpu_custom_call.1} parent=1 // pred_check
      _
    $region11: #{tpu_custom_call.1} parent=1 // pred_check_branch
      %34 = sbr.rel (0) target = $region13
    $region12: #{tpu_custom_call.1} parent=1 // pred_region
      %s36 = ssub.s32 1024, 1024
      %37 = vsyncadd [#allocation6], %s36
      %s38 = sshll.u32 [#allocation7], 4
      %s39 = int_to_ptr.vmem [resolvable:$true] %s38
      %44 = dma.hbm_to_vmem [thread:$0]  %s2, 1024, %s39, [#allocation6], 64, 64, 4
    $region13: #{tpu_custom_call.1} parent=1 // pred_fallthru
      _
    // Predicated region
    $region14: #{tpu_custom_call.1} parent=1 // pred_check
      _
    $region15: #{tpu_custom_call.1} parent=1 // pred_check_branch
      %46 = sbr.rel (0) target = $region17
    $region16: #{tpu_custom_call.1} parent=1 // pred_region
      %47 = dma.done [#allocation3], 128
    $region17: #{tpu_custom_call.1} parent=1 // pred_fallthru
      _
    // Predicated region
    $region18: #{tpu_custom_call.1} parent=1 // pred_check
      _
    $region19: #{tpu_custom_call.1} parent=1 // pred_check_branch
      %49 = sbr.rel (0) target = $region21
    $region20: #{tpu_custom_call.1} parent=1 // pred_region
      %50 = dma.done [#allocation6], 2048
    $region21: #{tpu_custom_call.1} parent=1 // pred_fallthru
      _
    // Predicated region
    $region22: #{tpu_custom_call.1} parent=1 // pred_check
      _
    $region23: #{tpu_custom_call.1} parent=1 // pred_check_branch
      %52 = sbr.rel (0) target = $region25
    $region24: #{tpu_custom_call.1} parent=1 // pred_region
      %53 = dma.done [#allocation6], 1024
    $region25: #{tpu_custom_call.1} parent=1 // pred_fallthru
      _
    %v55 = vld [vmem:[#allocation2] sm:$0xff]
    %v56 = vld [vmem:[#allocation5] sm:$0xf]
    %v57 = vld [vmem:[#allocation5 + $0x4] sm:$0xf]
    %v58 = vld [vmem:[#allocation5 + $0x8] sm:$0xf]
    %v59 = vld [vmem:[#allocation5 + $0xc] sm:$0xf]
    %v60 = vld [vmem:[#allocation5 + $0x10] sm:$0xf]
    %v61 = vld [vmem:[#allocation5 + $0x14] sm:$0xf]
    %v62 = vld [vmem:[#allocation5 + $0x18] sm:$0xf]
    %v63 = vld [vmem:[#allocation5 + $0x1c] sm:$0xf]
    %v64 = vld [vmem:[#allocation5 + $0x20] sm:$0xf]
    %v65 = vld [vmem:[#allocation5 + $0x24] sm:$0xf]
    %v66 = vld [vmem:[#allocation5 + $0x28] sm:$0xf]
    %v67 = vld [vmem:[#allocation5 + $0x2c] sm:$0xf]
    %v68 = vld [vmem:[#allocation5 + $0x30] sm:$0xf]
    %v69 = vld [vmem:[#allocation5 + $0x34] sm:$0xf]
    %v70 = vld [vmem:[#allocation5 + $0x38] sm:$0xf]
    %v71 = vld [vmem:[#allocation5 + $0x3c] sm:$0xf]
    %v72 = vld [vmem:[#allocation5 + $0x40] sm:$0xf]
    %v73 = vld [vmem:[#allocation5 + $0x44] sm:$0xf]
    %v74 = vld [vmem:[#allocation5 + $0x48] sm:$0xf]
    %v75 = vld [vmem:[#allocation5 + $0x4c] sm:$0xf]
    %v76 = vld [vmem:[#allocation5 + $0x50] sm:$0xf]
    %v77 = vld [vmem:[#allocation5 + $0x54] sm:$0xf]
    %v78 = vld [vmem:[#allocation5 + $0x58] sm:$0xf]
    %v79 = vld [vmem:[#allocation5 + $0x5c] sm:$0xf]
    %v80 = vld [vmem:[#allocation5 + $0x60] sm:$0xf]
    %v81 = vld [vmem:[#allocation5 + $0x64] sm:$0xf]
    %v82 = vld [vmem:[#allocation5 + $0x68] sm:$0xf]
    %v83 = vld [vmem:[#allocation5 + $0x6c] sm:$0xf]
    %v84 = vld [vmem:[#allocation5 + $0x70] sm:$0xf]
    %v85 = vld [vmem:[#allocation5 + $0x74] sm:$0xf]
    %v86 = vld [vmem:[#allocation5 + $0x78] sm:$0xf]
    %v87 = vld [vmem:[#allocation5 + $0x7c] sm:$0xf]
    %v89 = vunpack.c.l.b16 %v55
    %v90 = vunpack.c.h.b16 %v55
    %v91 = vpack.c.b16 %v89, %v89
    %v92 = vpack.c.b16 %v90, %v90
    %v127 = vunpack.c.l.b16 %v56
    %v128 = vunpack.c.l.b16 %v57
    %v129 = vunpack.c.l.b16 %v58
    %v130 = vunpack.c.l.b16 %v59
    %v131 = vunpack.c.l.b16 %v60
    %v132 = vunpack.c.l.b16 %v61
    %v133 = vunpack.c.l.b16 %v62
    %v134 = vunpack.c.l.b16 %v63
    %v135 = vunpack.c.l.b16 %v64
    %v136 = vunpack.c.l.b16 %v65
    %v137 = vunpack.c.l.b16 %v66
    %v138 = vunpack.c.l.b16 %v67
    %v139 = vunpack.c.l.b16 %v68
    %v140 = vunpack.c.l.b16 %v69
    %v141 = vunpack.c.l.b16 %v70
    %v142 = vunpack.c.l.b16 %v71
    %v143 = vunpack.c.l.b16 %v72
    %v144 = vunpack.c.l.b16 %v73
    %v145 = vunpack.c.l.b16 %v74
    %v146 = vunpack.c.l.b16 %v75
    %v147 = vunpack.c.l.b16 %v76
    %v148 = vunpack.c.l.b16 %v77
    %v149 = vunpack.c.l.b16 %v78
    %v150 = vunpack.c.l.b16 %v79
    %v151 = vunpack.c.l.b16 %v80
    %v152 = vunpack.c.l.b16 %v81
    %v153 = vunpack.c.l.b16 %v82
    %v154 = vunpack.c.l.b16 %v83
    %v155 = vunpack.c.l.b16 %v84
    %v156 = vunpack.c.l.b16 %v85
    %v157 = vunpack.c.l.b16 %v86
    %v158 = vunpack.c.l.b16 %v87
    %v159 = vpack.c.b16 %v128, %v127
    %v160 = vpack.c.b16 %v130, %v129
    %v161 = vpack.c.b16 %v132, %v131
    %v162 = vpack.c.b16 %v134, %v133
    %v163 = vpack.c.b16 %v136, %v135
    %v164 = vpack.c.b16 %v138, %v137
    %v165 = vpack.c.b16 %v140, %v139
    %v166 = vpack.c.b16 %v142, %v141
    %v167 = vpack.c.b16 %v144, %v143
    %v168 = vpack.c.b16 %v146, %v145
    %v169 = vpack.c.b16 %v148, %v147
    %v170 = vpack.c.b16 %v150, %v149
    %v171 = vpack.c.b16 %v152, %v151
    %v172 = vpack.c.b16 %v154, %v153
    %v173 = vpack.c.b16 %v156, %v155
    %v174 = vpack.c.b16 %v158, %v157
    %191 = vmatprep.subr.bf16.mxu0 0
    %192 = vmatpush1.bf16.msra.mxu0 %v159
    %193 = vmatprep.subr.bf16.mxu0 0
    %194 = vmatpush1.bf16.msra.mxu0 %v160
    %195 = vmatprep.subr.bf16.mxu0 0
    %196 = vmatpush1.bf16.msra.mxu0 %v161
    %197 = vmatprep.subr.bf16.mxu0 0
    %198 = vmatpush1.bf16.msra.mxu0 %v162
    %199 = vmatprep.subr.bf16.mxu0 0
    %200 = vmatpush1.bf16.msra.mxu0 %v163
    %201 = vmatprep.subr.bf16.mxu0 0
    %202 = vmatpush1.bf16.msra.mxu0 %v164
    %203 = vmatprep.subr.bf16.mxu0 0
    %204 = vmatpush1.bf16.msra.mxu0 %v165
    %205 = vmatprep.subr.bf16.mxu0 0
    %206 = vmatpush1.bf16.msra.mxu0 %v166
    %207 = vmatprep.subr.bf16.mxu0 0
    %208 = vmatpush1.bf16.msra.mxu0 %v167
    %209 = vmatprep.subr.bf16.mxu0 0
    %210 = vmatpush1.bf16.msra.mxu0 %v168
    %211 = vmatprep.subr.bf16.mxu0 0
    %212 = vmatpush1.bf16.msra.mxu0 %v169
    %213 = vmatprep.subr.bf16.mxu0 0
    %214 = vmatpush1.bf16.msra.mxu0 %v170
    %215 = vmatprep.subr.bf16.mxu0 0
    %216 = vmatpush1.bf16.msra.mxu0 %v171
    %217 = vmatprep.subr.bf16.mxu0 0
    %218 = vmatpush1.bf16.msra.mxu0 %v172
    %219 = vmatprep.subr.bf16.mxu0 0
    %220 = vmatpush1.bf16.msra.mxu0 %v173
    %221 = vmatprep.subr.bf16.mxu0 0
    %222 = vmatpush1.bf16.msra.mxu0 %v174
    %223 = vmatprep.mubr.bf16.mxu0 %v92
    %224 = vmatmul.mubr.bf16.gmra.mrb[0].mxu0 %v91
    %v225 = vpop.f32.mrb[0].mxu0
    %v226 = vadd.f32 0.0, %v225
    %v227 = vpop.f32.mrb[0].mxu0
    %v228 = vpop.f32.mrb[0].mxu0
    %v229 = vpop.f32.mrb[0].mxu0
    %230 = vdwg.mxu0
    %v231 = vmul.f32 %v226, %v226
    %232 = vadd.xlane.f32.xlu0 %v231
    %v233 = vpop.xlane.xlu0 %232
    %v234 = vmax.f32 %v233, 1e-30
    %v235 = vrsqrt.pop %v234
    %v236 = vpack.c.bf16 %v226, %v226
    %v237 = vld [vmem:[#allocation7] sm:$0xf]
    %v238 = vld [vmem:[#allocation7 + $0x4] sm:$0xf]
    %v239 = vld [vmem:[#allocation7 + $0x8] sm:$0xf]
    %v240 = vld [vmem:[#allocation7 + $0xc] sm:$0xf]
    %v241 = vld [vmem:[#allocation7 + $0x10] sm:$0xf]
    %v242 = vld [vmem:[#allocation7 + $0x14] sm:$0xf]
    %v243 = vld [vmem:[#allocation7 + $0x18] sm:$0xf]
    %v244 = vld [vmem:[#allocation7 + $0x1c] sm:$0xf]
    %v245 = vld [vmem:[#allocation7 + $0x20] sm:$0xf]
    %v246 = vld [vmem:[#allocation7 + $0x24] sm:$0xf]
    %v247 = vld [vmem:[#allocation7 + $0x28] sm:$0xf]
    %v248 = vld [vmem:[#allocation7 + $0x2c] sm:$0xf]
    %v249 = vld [vmem:[#allocation7 + $0x30] sm:$0xf]
    %v250 = vld [vmem:[#allocation7 + $0x34] sm:$0xf]
    %v251 = vld [vmem:[#allocation7 + $0x38] sm:$0xf]
    %v252 = vld [vmem:[#allocation7 + $0x3c] sm:$0xf]
    %v269 = vunpack.c.l.b16 %v237
    %v270 = vunpack.c.l.b16 %v238
    %v271 = vunpack.c.l.b16 %v239
    %v272 = vunpack.c.l.b16 %v240
    %v273 = vunpack.c.l.b16 %v241
    %v274 = vunpack.c.l.b16 %v242
    %v275 = vunpack.c.l.b16 %v243
    %v276 = vunpack.c.l.b16 %v244
    %v277 = vunpack.c.l.b16 %v245
    %v278 = vunpack.c.l.b16 %v246
    %v279 = vunpack.c.l.b16 %v247
    %v280 = vunpack.c.l.b16 %v248
    %v281 = vunpack.c.l.b16 %v249
    %v282 = vunpack.c.l.b16 %v250
    %v283 = vunpack.c.l.b16 %v251
    %v284 = vunpack.c.l.b16 %v252
    %v285 = vpack.c.b16 %v270, %v269
    %v286 = vpack.c.b16 %v272, %v271
    %v287 = vpack.c.b16 %v274, %v273
    %v288 = vpack.c.b16 %v276, %v275
    %v289 = vpack.c.b16 %v278, %v277
    %v290 = vpack.c.b16 %v280, %v279
    %v291 = vpack.c.b16 %v282, %v281
    %v292 = vpack.c.b16 %v284, %v283
    %301 = vmatprep.subr.bf16.mxu0 0
    %302 = vmatpush1.bf16.msra.mxu0 %v285
    %303 = vmatprep.subr.bf16.mxu0 0
    %304 = vmatpush1.bf16.msra.mxu0 %v286
    %305 = vmatprep.subr.bf16.mxu0 0
    %306 = vmatpush1.bf16.msra.mxu0 %v287
    %307 = vmatprep.subr.bf16.mxu0 0
    %308 = vmatpush1.bf16.msra.mxu0 %v288
    %309 = vmatprep.subr.bf16.mxu0 0
    %310 = vmatpush1.bf16.msra.mxu0 %v289
    %311 = vmatprep.subr.bf16.mxu0 0
    %312 = vmatpush1.bf16.msra.mxu0 %v290
    %313 = vmatprep.subr.bf16.mxu0 0
    %314 = vmatpush1.bf16.msra.mxu0 %v291
    %315 = vmatprep.subr.bf16.mxu0 0
    %316 = vmatpush1.bf16.msra.mxu0 %v292
    %317 = vmatprep.subr.bf16.mxu0 0
    %318 = vmatpush1.bf16.msra.mxu0 0
    %319 = vmatprep.subr.bf16.mxu0 0
    %320 = vmatpush1.bf16.msra.mxu0 0
    %321 = vmatprep.subr.bf16.mxu0 0
    %322 = vmatpush1.bf16.msra.mxu0 0
    %323 = vmatprep.subr.bf16.mxu0 0
    %324 = vmatpush1.bf16.msra.mxu0 0
    %325 = vmatprep.subr.bf16.mxu0 0
    %326 = vmatpush1.bf16.msra.mxu0 0
    %327 = vmatprep.subr.bf16.mxu0 0
    %328 = vmatpush1.bf16.msra.mxu0 0
    %329 = vmatprep.subr.bf16.mxu0 0
    %330 = vmatpush1.bf16.msra.mxu0 0
    %331 = vmatprep.subr.bf16.mxu0 0
    %332 = vmatpush1.bf16.msra.mxu0 0
    %333 = vmatprep.mubr.bf16.mxu0 0
    %334 = vmatmul.mubr.bf16.gmra.mrb[0].mxu0 %v236
    %v335 = vpop.f32.mrb[0].mxu0
    %v336 = vadd.f32 0.0, %v335
    %v337 = vpop.f32.mrb[0].mxu0
    %v338 = vpop.f32.mrb[0].mxu0
    %v339 = vpop.f32.mrb[0].mxu0
    %340 = vdwg.mxu0
    %v341 = vmul.f32 %v336, %v235
    %342 = vst [vmem:[#allocation8] sm:$0xff] %v341
    // Predicated region
    $region26: #{tpu_custom_call.1} parent=1 // pred_check
      _
    $region27: #{tpu_custom_call.1} parent=1 // pred_check_branch
      %344 = sbr.rel (0) target = $region29
    $region28: #{tpu_custom_call.1} parent=1 // pred_region
      %s346 = ssub.s32 128, 128
      %347 = vsyncadd [#allocation4], %s346
      %s349 = sshll.u32 [#allocation8], 4
      %s350 = int_to_ptr.vmem [resolvable:$true] %s349
      %352 = dma.vmem_to_hbm [thread:$0]  %s350, 128, %s3, [#allocation4]
    $region29: #{tpu_custom_call.1} parent=1 // pred_fallthru
      _
    // Predicated region
    $region30: #{tpu_custom_call.1} parent=1 // pred_check
      _
    $region31: #{tpu_custom_call.1} parent=1 // pred_check_branch
      %354 = sbr.rel (0) target = $region33
    $region32: #{tpu_custom_call.1} parent=1 // pred_region
      %355 = dma.done [#allocation4], 128
    $region33: #{tpu_custom_call.1} parent=1 // pred_fallthru
      _
    %356 = vsyncpa [#allocation3], 1
    %357 = vsyncpa [#allocation6], 1
    %358 = vsyncpa [#allocation4], 1

</llo_original>
